<compile_context>
chip_gen: v5e
topology: v5e:2x2
jax: 0.10.0
libtpu: 0.0.40
codegen_flags: <defaults>
</compile_context>

<pallas_src>
import functools

import jax
import jax.numpy as jnp
from jax.experimental import pallas as pl
from jax.experimental.pallas import tpu as pltpu

IN_FEATURES = 28 * 28   # 784
OUT_FEATURES = 10
MAX_TILE_B = 1024       # keeps live VMEM well under v7x's 64 MiB


def _round_up(x, m):
    return ((x + m - 1) // m) * m


def netlin_kernel(x_ref, w_ref, b_ref, o_ref):
    # x_ref: [TILE_B, 784] bf16, w_ref: [784, 10] bf16,
    # b_ref: [1, 10] f32,     o_ref: [TILE_B, 10] f32
    logits = (
        jnp.dot(x_ref[...], w_ref[...], preferred_element_type=jnp.float32)
        + b_ref[...]
    )
    # numerically-stable log_softmax over the class axis (f32 throughout)
    m = jnp.max(logits, axis=-1, keepdims=True)
    shifted = logits - m
    lse = jnp.log(jnp.sum(jnp.exp(shifted), axis=-1, keepdims=True))
    o_ref[...] = (shifted - lse).astype(o_ref.dtype)


def netlin_forward(x_nchw, w_t, b):
    """x_nchw: [B, 1, 28, 28] float32; w_t: [784, 10]; b: [10] -> [B, 10] f32."""
    B = x_nchw.shape[0]
    x2d = x_nchw.reshape(B, IN_FEATURES)          # glue reshape (plain JAX)

    # Batch tile: multiple of 16 (bf16 sublane packing), capped for VMEM.
    tile_b = min(MAX_TILE_B, _round_up(B, 16))
    b_pad = _round_up(B, tile_b)
    if b_pad != B:
        x2d = jnp.pad(x2d, ((0, b_pad - B), (0, 0)))

    # bf16 inputs halve HBM traffic; matmul still accumulates in f32.
    x_bf16 = x2d.astype(jnp.bfloat16)
    w_bf16 = w_t.astype(jnp.bfloat16)
    b2d = b.reshape(1, OUT_FEATURES).astype(jnp.float32)

    grid = (b_pad // tile_b,)

    cost = pl.CostEstimate(
        flops=2 * b_pad * IN_FEATURES * OUT_FEATURES,
        transcendentals=b_pad * OUT_FEATURES,
        bytes_accessed=(
            b_pad * IN_FEATURES * 2            # x (bf16)
            + IN_FEATURES * OUT_FEATURES * 2   # W (bf16)
            + OUT_FEATURES * 4                 # bias
            + b_pad * OUT_FEATURES * 4         # output (f32)
        ),
    )

    out = pl.pallas_call(
        netlin_kernel,
        out_shape=jax.ShapeDtypeStruct((b_pad, OUT_FEATURES), jnp.float32),
        grid=grid,
        in_specs=[
            pl.BlockSpec((tile_b, IN_FEATURES), lambda i: (i, 0)),   # x tiles
            pl.BlockSpec((IN_FEATURES, OUT_FEATURES), lambda i: (0, 0)),  # W resident
            pl.BlockSpec((1, OUT_FEATURES), lambda i: (0, 0)),            # b resident
        ],
        out_specs=pl.BlockSpec((tile_b, OUT_FEATURES), lambda i: (i, 0)),
        compiler_params=pltpu.CompilerParams(
            dimension_semantics=("parallel",),     # v7x: both TCs split the batch
            vmem_limit_bytes=48 * 1024 * 1024,     # explicit; safe on v5e/v6e/v7x
        ),
        cost_estimate=cost,
    )(x_bf16, w_bf16, b2d)

    return out[:B] if b_pad != B else out


def init_params(key):
    """Deterministic nn.Linear-style init: U(-1/sqrt(fan_in), 1/sqrt(fan_in))."""
    kw, kb = jax.random.split(key)
    bound = 1.0 / (IN_FEATURES ** 0.5)
    # PyTorch stores weight as [out, in]; we keep the transposed [in, out]
    # layout so the kernel does x @ W_T directly.
    w_t = jax.random.uniform(
        kw, (IN_FEATURES, OUT_FEATURES), jnp.float32, -bound, bound
    )
    b = jax.random.uniform(kb, (OUT_FEATURES,), jnp.float32, -bound, bound)
    return w_t, b


if __name__ == "__main__":
    key = jax.random.PRNGKey(0)
    k_x, k_p = jax.random.split(key)

    B = 8
    x = jax.random.normal(k_x, (B, 1, 28, 28), jnp.float32)  # NCHW input
    w_t, b = init_params(k_p)

    out = netlin_forward(x, w_t, b)
    out = jax.block_until_ready(out)

    # sanity check against a pure-JAX reference using the same bf16 input cast
    # (the kernel intentionally reads x/W as bf16 and accumulates in f32).
    ref_logits = jnp.dot(
        x.reshape(B, -1).astype(jnp.bfloat16),
        w_t.astype(jnp.bfloat16),
        preferred_element_type=jnp.float32,
    ) + b
    ref = jax.nn.log_softmax(ref_logits, axis=-1)
    assert out.shape == (B, OUT_FEATURES)
    assert jnp.allclose(out, ref, atol=1e-3, rtol=1e-3)

    # rows are valid log-probabilities
    assert jnp.allclose(jnp.sum(jnp.exp(out), axis=-1), 1.0, atol=1e-3)

    print("KERNEL_OK")
</pallas_src>

<mosaic_0001>
module attributes {stable_mosaic.version = 11 : i64} {
  func.func @netlin_kernel(%arg0: i32, %arg1: memref<16x784xbf16, #tpu.memory_space<vmem>>, %arg2: memref<784x10xbf16, #tpu.memory_space<vmem>>, %arg3: memref<1x10xf32, #tpu.memory_space<vmem>>, %arg4: memref<16x10xf32, #tpu.memory_space<vmem>>) attributes {dimension_semantics = [#tpu.dimension_semantics<parallel>], iteration_bounds = array<i64: 1>, scalar_prefetch = 0 : i64, scratch_operands = 0 : i64, tpu.core_type = #tpu.core_type<tc>, window_params = [{transform_indices = @transform_0, window_bounds = array<i64: 16, 784>}, {pipeline_mode = #tpu.pipeline_mode<synchronous>, transform_indices = @transform_1, window_bounds = array<i64: 784, 10>}, {pipeline_mode = #tpu.pipeline_mode<synchronous>, transform_indices = @transform_2, window_bounds = array<i64: 1, 10>}, {transform_indices = @transform_3, window_bounds = array<i64: 16, 10>}]} {
    %c0 = arith.constant 0 : index
    %c0_0 = arith.constant 0 : index
    %0 = vector.load %arg1[%c0, %c0_0] : memref<16x784xbf16, #tpu.memory_space<vmem>>, vector<16x784xbf16>
    %c0_1 = arith.constant 0 : index
    %c0_2 = arith.constant 0 : index
    %1 = vector.load %arg2[%c0_1, %c0_2] : memref<784x10xbf16, #tpu.memory_space<vmem>>, vector<784x10xbf16>
    %cst = arith.constant dense<0.000000e+00> : vector<16x10xf32>
    %2 = tpu.matmul %0, %1, %cst {dimension_numbers = #tpu.dot_dimension_numbers<[1], [0], [0], [1], [0, 0, 1, 1], [], []>} : vector<16x784xbf16>, vector<784x10xbf16>, vector<16x10xf32> -> vector<16x10xf32>
    %c0_3 = arith.constant 0 : index
    %c0_4 = arith.constant 0 : index
    %3 = vector.load %arg3[%c0_3, %c0_4] : memref<1x10xf32, #tpu.memory_space<vmem>>, vector<1x10xf32>
    %4 = vector.broadcast %3 : vector<1x10xf32> to vector<16x10xf32>
    %5 = arith.addf %2, %4 : vector<16x10xf32>
    %cst_5 = arith.constant dense<0xFF800000> : vector<16xf32>
    %6 = vector.multi_reduction <maximumf>, %5, %cst_5 [1] : vector<16x10xf32> to vector<16xf32>
    %7 = vector.shape_cast %6 : vector<16xf32> to vector<16x1xf32>
    %8 = vector.broadcast %7 : vector<16x1xf32> to vector<16x10xf32>
    %9 = arith.subf %5, %8 : vector<16x10xf32>
    %10 = math.exp %9 : vector<16x10xf32>
    %cst_6 = arith.constant dense<0.000000e+00> : vector<16xf32>
    %11 = vector.multi_reduction <add>, %10, %cst_6 [1] : vector<16x10xf32> to vector<16xf32>
    %12 = vector.shape_cast %11 : vector<16xf32> to vector<16x1xf32>
    %13 = math.log %12 : vector<16x1xf32>
    %14 = vector.broadcast %13 : vector<16x1xf32> to vector<16x10xf32>
    %15 = arith.subf %9, %14 : vector<16x10xf32>
    %c0_7 = arith.constant 0 : index
    %c0_8 = arith.constant 0 : index
    %16 = vector.load %arg4[%c0_7, %c0_8] : memref<16x10xf32, #tpu.memory_space<vmem>>, vector<16x10xf32>
    tpu.vector_store %arg4[%c0_7, %c0_8], %15 {strides = array<i32>} : memref<16x10xf32, #tpu.memory_space<vmem>>, vector<16x10xf32>,
    return
  }
  func.func @transform_0(%arg0: i32) -> (i32, i32) {
    %c0_i32 = arith.constant 0 : i32
    %c0_i32_0 = arith.constant 0 : i32
    return %arg0, %c0_i32 : i32, i32
  }
  func.func @transform_1(%arg0: i32) -> (i32, i32) {
    %c0_i32 = arith.constant 0 : i32
    %c0_i32_0 = arith.constant 0 : i32
    %c0_i32_1 = arith.constant 0 : i32
    return %c0_i32, %c0_i32_0 : i32, i32
  }
  func.func @transform_2(%arg0: i32) -> (i32, i32) {
    %c0_i32 = arith.constant 0 : i32
    %c0_i32_0 = arith.constant 0 : i32
    %c0_i32_1 = arith.constant 0 : i32
    return %c0_i32, %c0_i32_0 : i32, i32
  }
  func.func @transform_3(%arg0: i32) -> (i32, i32) {
    %c0_i32 = arith.constant 0 : i32
    %c0_i32_0 = arith.constant 0 : i32
    return %arg0, %c0_i32 : i32, i32
  }
}

</mosaic_0001>

<llo_original>
// kernel: tpu_custom_call.1
$region0: #{tpu_custom_call.1}
  #allocation0 [shape = 'u32[]', space=smem, size = 0x4, offset = 0x4, fixed_abs, tag = 'smem constant byte address 0x4 - core index']
  #allocation1 [shape = 'u32[72,128]{1,0:T(1,128)}', space=vmem, size = 0x9000, scoped, tag = 'internal scratch']
  %s0 = inlined_call_operand.vmem [shape: bf16[16,784], index: 0, kind: input, shape index: {}]
  %s1 = inlined_call_operand.vmem [shape: bf16[784,10], index: 1, kind: input, shape index: {}]
  %s2 = inlined_call_operand.vmem [shape: f32[1,10], index: 2, kind: input, shape index: {}]
  %s3 = inlined_call_operand.hbm [shape: f32[16,10], index: 3, kind: output, shape index: {}]
  %s4 = sld [smem:[#allocation0]]
  $region22: #{tpu_custom_call.1} parent=0
    _
  %s6 = ssub.s32 1, %s4
  %s7 = scalar_select 0, %s6, %s4
  $region1: #{tpu_custom_call.1} parent=0
    #allocation2 [shape = 'u8[8192]{0}', space=vmem, size = 0x2000, scoped, tag = 'output window, operand 0, single buffered']
    #allocation3 [shape = 's32[1]{0}', space=sflag, size = 0x4, scoped, tag = 'scoped memory for tpu_custom_call.1']
    %8 = vsyncpa [#allocation3], 0
    // Predicated region
    $region2: #{tpu_custom_call.1} parent=1 // pred_check
      _
    $region3: #{tpu_custom_call.1} parent=1 // pred_check_branch
      %10 = sbr.rel (0) target = $region5
    $region4: #{tpu_custom_call.1} parent=1 // pred_region
      _
    $region5: #{tpu_custom_call.1} parent=1 // pred_fallthru
      _
    // Predicated region
    $region6: #{tpu_custom_call.1} parent=1 // pred_check
      _
    $region7: #{tpu_custom_call.1} parent=1 // pred_check_branch
      %12 = sbr.rel (0) target = $region9
    $region8: #{tpu_custom_call.1} parent=1 // pred_region
      _
    $region9: #{tpu_custom_call.1} parent=1 // pred_fallthru
      _
    // Predicated region
    $region10: #{tpu_custom_call.1} parent=1 // pred_check
      _
    $region11: #{tpu_custom_call.1} parent=1 // pred_check_branch
      %14 = sbr.rel (0) target = $region13
    $region12: #{tpu_custom_call.1} parent=1 // pred_region
      _
    $region13: #{tpu_custom_call.1} parent=1 // pred_fallthru
      _
    %v16 = vld [vmem:[%s0] sm:$0xff]
    %v17 = vld [vmem:[%s0 + $0x8] sm:$0xff]
    %v18 = vld [vmem:[%s0 + $0x10] sm:$0xff]
    %v19 = vld [vmem:[%s0 + $0x18] sm:$0xf]
    %v20 = vld [vmem:[%s0 + $0x1c] sm:$0xff]
    %v21 = vld [vmem:[%s0 + $0x24] sm:$0xff]
    %v22 = vld [vmem:[%s0 + $0x2c] sm:$0xff]
    %v23 = vld [vmem:[%s0 + $0x34] sm:$0xf]
    %v24 = vld [vmem:[%s1] sm:$0xf]
    %v25 = vld [vmem:[%s1 + $0x4] sm:$0xf]
    %v26 = vld [vmem:[%s1 + $0x8] sm:$0xf]
    %v27 = vld [vmem:[%s1 + $0xc] sm:$0xf]
    %v28 = vld [vmem:[%s1 + $0x10] sm:$0xf]
    %v29 = vld [vmem:[%s1 + $0x14] sm:$0xf]
    %v30 = vld [vmem:[%s1 + $0x18] sm:$0xf]
    %v31 = vld [vmem:[%s1 + $0x1c] sm:$0xf]
    %v32 = vld [vmem:[%s1 + $0x20] sm:$0xf]
    %v33 = vld [vmem:[%s1 + $0x24] sm:$0xf]
    %v34 = vld [vmem:[%s1 + $0x28] sm:$0xf]
    %v35 = vld [vmem:[%s1 + $0x2c] sm:$0xf]
    %v36 = vld [vmem:[%s1 + $0x30] sm:$0xf]
    %v37 = vld [vmem:[%s1 + $0x34] sm:$0xf]
    %v38 = vld [vmem:[%s1 + $0x38] sm:$0xf]
    %v39 = vld [vmem:[%s1 + $0x3c] sm:$0xf]
    %v40 = vld [vmem:[%s1 + $0x40] sm:$0xf]
    %v41 = vld [vmem:[%s1 + $0x44] sm:$0xf]
    %v42 = vld [vmem:[%s1 + $0x48] sm:$0xf]
    %v43 = vld [vmem:[%s1 + $0x4c] sm:$0xf]
    %v44 = vld [vmem:[%s1 + $0x50] sm:$0xf]
    %v45 = vld [vmem:[%s1 + $0x54] sm:$0xf]
    %v46 = vld [vmem:[%s1 + $0x58] sm:$0xf]
    %v47 = vld [vmem:[%s1 + $0x5c] sm:$0xf]
    %v48 = vld [vmem:[%s1 + $0x60] sm:$0xf]
    %v49 = vld [vmem:[%s1 + $0x64] sm:$0xf]
    %v50 = vld [vmem:[%s1 + $0x68] sm:$0xf]
    %v51 = vld [vmem:[%s1 + $0x6c] sm:$0xf]
    %v52 = vld [vmem:[%s1 + $0x70] sm:$0xf]
    %v53 = vld [vmem:[%s1 + $0x74] sm:$0xf]
    %v54 = vld [vmem:[%s1 + $0x78] sm:$0xf]
    %v55 = vld [vmem:[%s1 + $0x7c] sm:$0xf]
    %v56 = vld [vmem:[%s1 + $0x80] sm:$0xf]
    %v57 = vld [vmem:[%s1 + $0x84] sm:$0xf]
    %v58 = vld [vmem:[%s1 + $0x88] sm:$0xf]
    %v59 = vld [vmem:[%s1 + $0x8c] sm:$0xf]
    %v60 = vld [vmem:[%s1 + $0x90] sm:$0xf]
    %v61 = vld [vmem:[%s1 + $0x94] sm:$0xf]
    %v62 = vld [vmem:[%s1 + $0x98] sm:$0xf]
    %v63 = vld [vmem:[%s1 + $0x9c] sm:$0xf]
    %v64 = vld [vmem:[%s1 + $0xa0] sm:$0xf]
    %v65 = vld [vmem:[%s1 + $0xa4] sm:$0xf]
    %v66 = vld [vmem:[%s1 + $0xa8] sm:$0xf]
    %v67 = vld [vmem:[%s1 + $0xac] sm:$0xf]
    %v68 = vld [vmem:[%s1 + $0xb0] sm:$0xf]
    %v69 = vld [vmem:[%s1 + $0xb4] sm:$0xf]
    %v70 = vld [vmem:[%s1 + $0xb8] sm:$0xf]
    %v71 = vld [vmem:[%s1 + $0xbc] sm:$0xf]
    %v72 = vld [vmem:[%s1 + $0xc0] sm:$0xf]
    %v73 = vld [vmem:[%s1 + $0xc4] sm:$0xf]
    %v74 = vld [vmem:[%s1 + $0xc8] sm:$0xf]
    %v75 = vld [vmem:[%s1 + $0xcc] sm:$0xf]
    %v76 = vld [vmem:[%s1 + $0xd0] sm:$0xf]
    %v77 = vld [vmem:[%s1 + $0xd4] sm:$0xf]
    %v78 = vld [vmem:[%s1 + $0xd8] sm:$0xf]
    %v79 = vld [vmem:[%s1 + $0xdc] sm:$0xf]
    %v80 = vld [vmem:[%s1 + $0xe0] sm:$0xf]
    %v81 = vld [vmem:[%s1 + $0xe4] sm:$0xf]
    %v82 = vld [vmem:[%s1 + $0xe8] sm:$0xf]
    %v83 = vld [vmem:[%s1 + $0xec] sm:$0xf]
    %v84 = vld [vmem:[%s1 + $0xf0] sm:$0xf]
    %v85 = vld [vmem:[%s1 + $0xf4] sm:$0xf]
    %v86 = vld [vmem:[%s1 + $0xf8] sm:$0xf]
    %v87 = vld [vmem:[%s1 + $0xfc] sm:$0xf]
    %v88 = vld [vmem:[%s1 + $0x100] sm:$0xf]
    %v89 = vld [vmem:[%s1 + $0x104] sm:$0xf]
    %v90 = vld [vmem:[%s1 + $0x108] sm:$0xf]
    %v91 = vld [vmem:[%s1 + $0x10c] sm:$0xf]
    %v92 = vld [vmem:[%s1 + $0x110] sm:$0xf]
    %v93 = vld [vmem:[%s1 + $0x114] sm:$0xf]
    %v94 = vld [vmem:[%s1 + $0x118] sm:$0xf]
    %v95 = vld [vmem:[%s1 + $0x11c] sm:$0xf]
    %v96 = vld [vmem:[%s1 + $0x120] sm:$0xf]
    %v97 = vld [vmem:[%s1 + $0x124] sm:$0xf]
    %v98 = vld [vmem:[%s1 + $0x128] sm:$0xf]
    %v99 = vld [vmem:[%s1 + $0x12c] sm:$0xf]
    %v100 = vld [vmem:[%s1 + $0x130] sm:$0xf]
    %v101 = vld [vmem:[%s1 + $0x134] sm:$0xf]
    %v102 = vld [vmem:[%s1 + $0x138] sm:$0xf]
    %v103 = vld [vmem:[%s1 + $0x13c] sm:$0xf]
    %v104 = vld [vmem:[%s1 + $0x140] sm:$0xf]
    %v105 = vld [vmem:[%s1 + $0x144] sm:$0xf]
    %v106 = vld [vmem:[%s1 + $0x148] sm:$0xf]
    %v107 = vld [vmem:[%s1 + $0x14c] sm:$0xf]
    %v108 = vld [vmem:[%s1 + $0x150] sm:$0xf]
    %v109 = vld [vmem:[%s1 + $0x154] sm:$0xf]
    %v110 = vld [vmem:[%s1 + $0x158] sm:$0xf]
    %v111 = vld [vmem:[%s1 + $0x15c] sm:$0xf]
    %v112 = vld [vmem:[%s1 + $0x160] sm:$0xf]
    %v113 = vld [vmem:[%s1 + $0x164] sm:$0xf]
    %v114 = vld [vmem:[%s1 + $0x168] sm:$0xf]
    %v115 = vld [vmem:[%s1 + $0x16c] sm:$0xf]
    %v116 = vld [vmem:[%s1 + $0x170] sm:$0xf]
    %v117 = vld [vmem:[%s1 + $0x174] sm:$0xf]
    %v118 = vld [vmem:[%s1 + $0x178] sm:$0xf]
    %v119 = vld [vmem:[%s1 + $0x17c] sm:$0xf]
    %v120 = vld [vmem:[%s1 + $0x180] sm:$0xf]
    %v121 = vld [vmem:[%s1 + $0x184] sm:$0xf]
    %v122 = vld [vmem:[%s2] sm:$0x1]
    %v124 = vperm.slane %v122, 0
    %v134 = vunpack.c.l.b16 %v16
    %v135 = vunpack.c.h.b16 %v16
    %v136 = vunpack.c.l.b16 %v17
    %v137 = vunpack.c.h.b16 %v17
    %v138 = vunpack.c.l.b16 %v18
    %v139 = vunpack.c.h.b16 %v18
    %v140 = vunpack.c.l.b16 %v19
    %v141 = vunpack.c.l.b16 %v20
    %v142 = vunpack.c.h.b16 %v20
    %v143 = vunpack.c.l.b16 %v21
    %v144 = vunpack.c.h.b16 %v21
    %v145 = vunpack.c.l.b16 %v22
    %v146 = vunpack.c.h.b16 %v22
    %v147 = vunpack.c.l.b16 %v23
    %v148 = vpack.c.b16 %v141, %v134
    %v149 = vpack.c.b16 %v142, %v135
    %v150 = vpack.c.b16 %v143, %v136
    %v151 = vpack.c.b16 %v144, %v137
    %v152 = vpack.c.b16 %v145, %v138
    %v153 = vpack.c.b16 %v146, %v139
    %v154 = vpack.c.b16 %v147, %v140
    %v259 = vunpack.c.l.b16 %v24
    %v260 = vunpack.c.l.b16 %v25
    %v261 = vunpack.c.l.b16 %v26
    %v262 = vunpack.c.l.b16 %v27
    %v263 = vunpack.c.l.b16 %v28
    %v264 = vunpack.c.l.b16 %v29
    %v265 = vunpack.c.l.b16 %v30
    %v266 = vunpack.c.l.b16 %v31
    %v267 = vunpack.c.l.b16 %v32
    %v268 = vunpack.c.l.b16 %v33
    %v269 = vunpack.c.l.b16 %v34
    %v270 = vunpack.c.l.b16 %v35
    %v271 = vunpack.c.l.b16 %v36
    %v272 = vunpack.c.l.b16 %v37
    %v273 = vunpack.c.l.b16 %v38
    %v274 = vunpack.c.l.b16 %v39
    %v275 = vunpack.c.l.b16 %v40
    %v276 = vunpack.c.l.b16 %v41
    %v277 = vunpack.c.l.b16 %v42
    %v278 = vunpack.c.l.b16 %v43
    %v279 = vunpack.c.l.b16 %v44
    %v280 = vunpack.c.l.b16 %v45
    %v281 = vunpack.c.l.b16 %v46
    %v282 = vunpack.c.l.b16 %v47
    %v283 = vunpack.c.l.b16 %v48
    %v284 = vunpack.c.l.b16 %v49
    %v285 = vunpack.c.l.b16 %v50
    %v286 = vunpack.c.l.b16 %v51
    %v287 = vunpack.c.l.b16 %v52
    %v288 = vunpack.c.l.b16 %v53
    %v289 = vunpack.c.l.b16 %v54
    %v290 = vunpack.c.l.b16 %v55
    %v291 = vunpack.c.l.b16 %v56
    %v292 = vunpack.c.l.b16 %v57
    %v293 = vunpack.c.l.b16 %v58
    %v294 = vunpack.c.l.b16 %v59
    %v295 = vunpack.c.l.b16 %v60
    %v296 = vunpack.c.l.b16 %v61
    %v297 = vunpack.c.l.b16 %v62
    %v298 = vunpack.c.l.b16 %v63
    %v299 = vunpack.c.l.b16 %v64
    %v300 = vunpack.c.l.b16 %v65
    %v301 = vunpack.c.l.b16 %v66
    %v302 = vunpack.c.l.b16 %v67
    %v303 = vunpack.c.l.b16 %v68
    %v304 = vunpack.c.l.b16 %v69
    %v305 = vunpack.c.l.b16 %v70
    %v306 = vunpack.c.l.b16 %v71
    %v307 = vunpack.c.l.b16 %v72
    %v308 = vunpack.c.l.b16 %v73
    %v309 = vunpack.c.l.b16 %v74
    %v310 = vunpack.c.l.b16 %v75
    %v311 = vunpack.c.l.b16 %v76
    %v312 = vunpack.c.l.b16 %v77
    %v313 = vunpack.c.l.b16 %v78
    %v314 = vunpack.c.l.b16 %v79
    %v315 = vunpack.c.l.b16 %v80
    %v316 = vunpack.c.l.b16 %v81
    %v317 = vunpack.c.l.b16 %v82
    %v318 = vunpack.c.l.b16 %v83
    %v319 = vunpack.c.l.b16 %v84
    %v320 = vunpack.c.l.b16 %v85
    %v321 = vunpack.c.l.b16 %v86
    %v322 = vunpack.c.l.b16 %v87
    %v323 = vunpack.c.l.b16 %v88
    %v324 = vunpack.c.l.b16 %v89
    %v325 = vunpack.c.l.b16 %v90
    %v326 = vunpack.c.l.b16 %v91
    %v327 = vunpack.c.l.b16 %v92
    %v328 = vunpack.c.l.b16 %v93
    %v329 = vunpack.c.l.b16 %v94
    %v330 = vunpack.c.l.b16 %v95
    %v331 = vunpack.c.l.b16 %v96
    %v332 = vunpack.c.l.b16 %v97
    %v333 = vunpack.c.l.b16 %v98
    %v334 = vunpack.c.l.b16 %v99
    %v335 = vunpack.c.l.b16 %v100
    %v336 = vunpack.c.l.b16 %v101
    %v337 = vunpack.c.l.b16 %v102
    %v338 = vunpack.c.l.b16 %v103
    %v339 = vunpack.c.l.b16 %v104
    %v340 = vunpack.c.l.b16 %v105
    %v341 = vunpack.c.l.b16 %v106
    %v342 = vunpack.c.l.b16 %v107
    %v343 = vunpack.c.l.b16 %v108
    %v344 = vunpack.c.l.b16 %v109
    %v345 = vunpack.c.l.b16 %v110
    %v346 = vunpack.c.l.b16 %v111
    %v347 = vunpack.c.l.b16 %v112
    %v348 = vunpack.c.l.b16 %v113
    %v349 = vunpack.c.l.b16 %v114
    %v350 = vunpack.c.l.b16 %v115
    %v351 = vunpack.c.l.b16 %v116
    %v352 = vunpack.c.l.b16 %v117
    %v353 = vunpack.c.l.b16 %v118
    %v354 = vunpack.c.l.b16 %v119
    %v355 = vunpack.c.l.b16 %v120
    %v356 = vunpack.c.l.b16 %v121
    %v357 = vpack.c.b16 %v260, %v259
    %v358 = vpack.c.b16 %v262, %v261
    %v359 = vpack.c.b16 %v264, %v263
    %v360 = vpack.c.b16 %v266, %v265
    %v361 = vpack.c.b16 %v268, %v267
    %v362 = vpack.c.b16 %v270, %v269
    %v363 = vpack.c.b16 %v272, %v271
    %v364 = vpack.c.b16 %v274, %v273
    %v365 = vpack.c.b16 %v276, %v275
    %v366 = vpack.c.b16 %v278, %v277
    %v367 = vpack.c.b16 %v280, %v279
    %v368 = vpack.c.b16 %v282, %v281
    %v369 = vpack.c.b16 %v284, %v283
    %v370 = vpack.c.b16 %v286, %v285
    %v371 = vpack.c.b16 %v288, %v287
    %v372 = vpack.c.b16 %v290, %v289
    %v373 = vpack.c.b16 %v292, %v291
    %v374 = vpack.c.b16 %v294, %v293
    %v375 = vpack.c.b16 %v296, %v295
    %v376 = vpack.c.b16 %v298, %v297
    %v377 = vpack.c.b16 %v300, %v299
    %v378 = vpack.c.b16 %v302, %v301
    %v379 = vpack.c.b16 %v304, %v303
    %v380 = vpack.c.b16 %v306, %v305
    %v381 = vpack.c.b16 %v308, %v307
    %v382 = vpack.c.b16 %v310, %v309
    %v383 = vpack.c.b16 %v312, %v311
    %v384 = vpack.c.b16 %v314, %v313
    %v385 = vpack.c.b16 %v316, %v315
    %v386 = vpack.c.b16 %v318, %v317
    %v387 = vpack.c.b16 %v320, %v319
    %v388 = vpack.c.b16 %v322, %v321
    %v389 = vpack.c.b16 %v324, %v323
    %v390 = vpack.c.b16 %v326, %v325
    %v391 = vpack.c.b16 %v328, %v327
    %v392 = vpack.c.b16 %v330, %v329
    %v393 = vpack.c.b16 %v332, %v331
    %v394 = vpack.c.b16 %v334, %v333
    %v395 = vpack.c.b16 %v336, %v335
    %v396 = vpack.c.b16 %v338, %v337
    %v397 = vpack.c.b16 %v340, %v339
    %v398 = vpack.c.b16 %v342, %v341
    %v399 = vpack.c.b16 %v344, %v343
    %v400 = vpack.c.b16 %v346, %v345
    %v401 = vpack.c.b16 %v348, %v347
    %v402 = vpack.c.b16 %v350, %v349
    %v403 = vpack.c.b16 %v352, %v351
    %v404 = vpack.c.b16 %v354, %v353
    %v405 = vpack.c.b16 %v356, %v355
    %vm455 = vcmask 130048
    %v457 = vsel %vm455, %v154, 0
    %459 = vmatpush.bf16.msra.mxu0 %v364
    %460 = vmatpush.bf16.msra.mxu0 %v363
    %461 = vmatpush.bf16.msra.mxu0 %v362
    %462 = vmatpush.bf16.msra.mxu0 %v361
    %463 = vmatpush.bf16.msra.mxu0 %v360
    %464 = vmatpush.bf16.msra.mxu0 %v359
    %465 = vmatpush.bf16.msra.mxu0 %v358
    %466 = vmatpush.bf16.msra.mxu0 %v357
    %467 = vmatmul.bf16.gmra.mxu0 %v148
    %v468 = vpop.f32.mrf.mxu0
    %v469 = vadd.f32 %v124, %v468
    %v470 = vpop.f32.mrf.mxu0
    %v471 = vadd.f32 %v124, %v470
    %472 = vdwg.mxu0
    %473 = vmatpush.bf16.msra.mxu0 %v372
    %474 = vmatpush.bf16.msra.mxu0 %v371
    %475 = vmatpush.bf16.msra.mxu0 %v370
    %476 = vmatpush.bf16.msra.mxu0 %v369
    %477 = vmatpush.bf16.msra.mxu0 %v368
    %478 = vmatpush.bf16.msra.mxu0 %v367
    %479 = vmatpush.bf16.msra.mxu0 %v366
    %480 = vmatpush.bf16.msra.mxu0 %v365
    %481 = vmatmul.bf16.gmra.mxu0 %v149
    %v482 = vpop.f32.mrf.mxu0
    %v483 = vadd.f32 %v469, %v482
    %v484 = vpop.f32.mrf.mxu0
    %v485 = vadd.f32 %v471, %v484
    %486 = vdwg.mxu0
    %487 = vmatpush.bf16.msra.mxu0 %v380
    %488 = vmatpush.bf16.msra.mxu0 %v379
    %489 = vmatpush.bf16.msra.mxu0 %v378
    %490 = vmatpush.bf16.msra.mxu0 %v377
    %491 = vmatpush.bf16.msra.mxu0 %v376
    %492 = vmatpush.bf16.msra.mxu0 %v375
    %493 = vmatpush.bf16.msra.mxu0 %v374
    %494 = vmatpush.bf16.msra.mxu0 %v373
    %495 = vmatmul.bf16.gmra.mxu0 %v150
    %v496 = vpop.f32.mrf.mxu0
    %v497 = vadd.f32 %v483, %v496
    %v498 = vpop.f32.mrf.mxu0
    %v499 = vadd.f32 %v485, %v498
    %500 = vdwg.mxu0
    %501 = vmatpush.bf16.msra.mxu0 %v388
    %502 = vmatpush.bf16.msra.mxu0 %v387
    %503 = vmatpush.bf16.msra.mxu0 %v386
    %504 = vmatpush.bf16.msra.mxu0 %v385
    %505 = vmatpush.bf16.msra.mxu0 %v384
    %506 = vmatpush.bf16.msra.mxu0 %v383
    %507 = vmatpush.bf16.msra.mxu0 %v382
    %508 = vmatpush.bf16.msra.mxu0 %v381
    %509 = vmatmul.bf16.gmra.mxu0 %v151
    %v510 = vpop.f32.mrf.mxu0
    %v511 = vadd.f32 %v497, %v510
    %v512 = vpop.f32.mrf.mxu0
    %v513 = vadd.f32 %v499, %v512
    %514 = vdwg.mxu0
    %515 = vmatpush.bf16.msra.mxu0 %v396
    %516 = vmatpush.bf16.msra.mxu0 %v395
    %517 = vmatpush.bf16.msra.mxu0 %v394
    %518 = vmatpush.bf16.msra.mxu0 %v393
    %519 = vmatpush.bf16.msra.mxu0 %v392
    %520 = vmatpush.bf16.msra.mxu0 %v391
    %521 = vmatpush.bf16.msra.mxu0 %v390
    %522 = vmatpush.bf16.msra.mxu0 %v389
    %523 = vmatmul.bf16.gmra.mxu0 %v152
    %v524 = vpop.f32.mrf.mxu0
    %v525 = vadd.f32 %v511, %v524
    %v526 = vpop.f32.mrf.mxu0
    %v527 = vadd.f32 %v513, %v526
    %528 = vdwg.mxu0
    %529 = vmatpush.bf16.msra.mxu0 %v404
    %530 = vmatpush.bf16.msra.mxu0 %v403
    %531 = vmatpush.bf16.msra.mxu0 %v402
    %532 = vmatpush.bf16.msra.mxu0 %v401
    %533 = vmatpush.bf16.msra.mxu0 %v400
    %534 = vmatpush.bf16.msra.mxu0 %v399
    %535 = vmatpush.bf16.msra.mxu0 %v398
    %536 = vmatpush.bf16.msra.mxu0 %v397
    %537 = vmatmul.bf16.gmra.mxu0 %v153
    %v538 = vpop.f32.mrf.mxu0
    %v539 = vadd.f32 %v525, %v538
    %v540 = vpop.f32.mrf.mxu0
    %v541 = vadd.f32 %v527, %v540
    %542 = vdwg.mxu0
    %543 = vmatpush.bf16.msra.mxu0 0
    %544 = vmatpush.bf16.msra.mxu0 0
    %545 = vmatpush.bf16.msra.mxu0 0
    %546 = vmatpush.bf16.msra.mxu0 0
    %547 = vmatpush.bf16.msra.mxu0 0
    %548 = vmatpush.bf16.msra.mxu0 0
    %549 = vmatpush.bf16.msra.mxu0 0
    %550 = vmatpush.bf16.msra.mxu0 %v405
    %551 = vmatmul.bf16.gmra.mxu0 %v457
    %v552 = vpop.f32.mrf.mxu0
    %v553 = vadd.f32 %v539, %v552
    %v554 = vpop.f32.mrf.mxu0
    %v555 = vadd.f32 %v541, %v554
    %556 = vdwg.mxu0
    %vm557 = vcmask 80896
    %v558 = vsel %vm557, %v553, -inf
    %559 = vmax.xlane.f32.xlu0 %v558
    %v560 = vpop.xlane.xlu0 %559
    %v561 = vsel %vm557, %v555, -inf
    %562 = vmax.xlane.f32.xlu0 %v561
    %v563 = vpop.xlane.xlu0 %562
    %v564 = vsub.f32 %v553, %v560
    %v565 = vsub.f32 %v555, %v563
    %v566 = vmul.f32 %v564, 1.442695
    %v567 = vpow.pop %v566
    %v568 = vmul.f32 %v565, 1.442695
    %v569 = vpow.pop %v568
    %v570 = vsel %vm557, %v567, 0.0
    %571 = vadd.xlane.f32.xlu0 %v570
    %v572 = vpop.xlane.xlu0 %571
    %v573 = vsel %vm557, %v569, 0.0
    %574 = vadd.xlane.f32.xlu0 %v573
    %v575 = vpop.xlane.xlu0 %574
    %v576 = vlog2.pop %v572
    %v577 = vmul.f32 %v576, 0.6931472
    %v578 = vlog2.pop %v575
    %v579 = vmul.f32 %v578, 0.6931472
    %v580 = vsub.f32 %v564, %v577
    %v581 = vsub.f32 %v565, %v579
    %582 = vst.msk [vmem:[#allocation2] sm:$0xff] %vm557, %v580
    %583 = vst.msk [vmem:[#allocation2 + $0x8] sm:$0xff] %vm557, %v581
    // Predicated region
    $region14: #{tpu_custom_call.1} parent=1 // pred_check
      _
    $region15: #{tpu_custom_call.1} parent=1 // pred_check_branch
      %585 = sbr.rel (0) target = $region17
    $region16: #{tpu_custom_call.1} parent=1 // pred_region
      %587 = vsyncadd [#allocation3], 0
      %s588 = sshll.u32 [#allocation2], 4
      %s589 = int_to_ptr.vmem [resolvable:$true] %s588
      %s590 = sshll.u32 %s3, 4
      %s591 = int_to_ptr.hbm [resolvable:$true] %s590
      %596 = dma.vmem_to_hbm [thread:$0]  %s589, 256, %s591, [#allocation3], 128, 128, 8
    $region17: #{tpu_custom_call.1} parent=1 // pred_fallthru
      _
    // Predicated region
    $region18: #{tpu_custom_call.1} parent=1 // pred_check
      _
    $region19: #{tpu_custom_call.1} parent=1 // pred_check_branch
      %598 = sbr.rel (0) target = $region21
    $region20: #{tpu_custom_call.1} parent=1 // pred_region
      %600 = dma.done [#allocation3], 256
    $region21: #{tpu_custom_call.1} parent=1 // pred_fallthru
      _
    %601 = vsyncpa [#allocation3], 1

</llo_original>
